<compile_context>
chip_gen: v7x
topology: tpu7x:2x2x1
jax: 0.10.0
libtpu: 0.0.40
codegen_flags: <defaults>
</compile_context>

<pallas_src>
import math

import jax
import jax.numpy as jnp
from jax import lax
from jax.experimental import pallas as pl
from jax.experimental.pallas import tpu as pltpu


LANE = 128
ALPHA = 0.1
LAMBDA = 0.5
N_LAYERS = 64
NEG_MASK = -1e30  # bias for padded class columns -> exp() underflows to 0


def _round_up(v, m):
    return (v + m - 1) // m * m


# ----------------------------------------------------------------------------
# Fused Pallas kernel: Linear+ReLU -> 64 GCNII layers (fori_loop) -> log_softmax
# ----------------------------------------------------------------------------

def fused_gcnii_kernel(coef_ref,                 # SMEM (3, L) f32
                       x_in_ref,                 # VMEM (N, F)      f32
                       w_in_ref, b_in_ref,       # VMEM (F, H),(1,H) f32
                       w1s_ref, w2s_ref,         # VMEM (L, H, H)   bf16 (resident)
                       a_ref,                    # VMEM (N, N)      bf16 (resident)
                       w_out_ref, b_out_ref,     # VMEM (H, Cp),(1,Cp) f32
                       o_ref):                   # VMEM (N, Cp)     f32 out
    # ---- input projection + ReLU; result is both h0 and the initial x ------
    h0 = jnp.maximum(
        jnp.dot(x_in_ref[...], w_in_ref[...],
                preferred_element_type=jnp.float32) + b_in_ref[...], 0.0)

    a = a_ref[...]                      # (N, N) bf16, stays in vregs/VMEM
    h0_b = h0.astype(jnp.bfloat16)      # bf16 copy for the per-layer W2 matmul

    n_layers = w1s_ref.shape[0]

    def layer(l, x):                    # x: (N, H) f32 carried activation
        c_x = coef_ref[0, l]            # (1 - beta) * (1 - alpha)
        c_w = coef_ref[1, l]            # beta
        c_h = coef_ref[2, l]            # (1 - beta) * alpha

        x_b = x.astype(jnp.bfloat16)
        xw = jnp.dot(x_b, w1s_ref[l], preferred_element_type=jnp.float32)
        hw = jnp.dot(h0_b, w2s_ref[l], preferred_element_type=jnp.float32)
        support = c_x * x + c_w * xw                      # f32
        initial = c_h * h0 + c_w * hw                     # f32
        agg = jnp.dot(a, support.astype(jnp.bfloat16),
                      preferred_element_type=jnp.float32)
        return jnp.maximum(agg + initial, 0.0)            # ReLU, stays f32

    x = lax.fori_loop(0, n_layers, layer, h0)

    # ---- output projection + log_softmax (padded classes biased to -1e30) --
    y = jnp.dot(x, w_out_ref[...],
                preferred_element_type=jnp.float32) + b_out_ref[...]
    m = jnp.max(y, axis=1, keepdims=True)
    z = y - m
    lse = jnp.log(jnp.sum(jnp.exp(z), axis=1, keepdims=True))
    o_ref[...] = z - lse


# ----------------------------------------------------------------------------
# Wrapper: dtype casts, class-lane padding, coefficient precompute, one call
# ----------------------------------------------------------------------------

@jax.jit
def gcnii_forward(params, x, a_hat):
    N, F = x.shape
    L, H, _ = params["w1s"].shape
    C = params["w_out"].shape[1]
    Cp = _round_up(C, LANE)

    f32, bf16 = jnp.float32, jnp.bfloat16

    w_in = params["w_in"].astype(f32)
    b_in = params["b_in"].astype(f32)                       # (1, H)
    w1s = params["w1s"].astype(bf16)                        # (L, H, H) bf16
    w2s = params["w2s"].astype(bf16)                        # (L, H, H) bf16
    a_b = a_hat.astype(bf16)                                # (N, N)   bf16
    # Pad only the class (lane) axis of the output projection.
    w_out = jnp.zeros((H, Cp), f32).at[:, :C].set(params["w_out"])
    b_out = jnp.full((1, Cp), NEG_MASK, f32).at[:, :C].set(params["b_out"])

    # Per-layer coefficients: beta_i = log(lambda / (i + 1) + 1), i = 0..L-1
    idx = jnp.arange(1, L + 1, dtype=f32)
    beta = jnp.log(LAMBDA / idx + 1.0)
    coefs = jnp.stack([(1.0 - beta) * (1.0 - ALPHA),
                       beta,
                       (1.0 - beta) * ALPHA], axis=0)       # (3, L) -> SMEM

    flops = (2 * N * F * H
             + L * (4 * N * H * H + 2 * N * N * H)
             + 2 * N * H * Cp)
    bytes_accessed = (4 * (N * F + F * H + H + H * Cp + Cp + N * Cp + 3 * L)
                      + 2 * (2 * L * H * H + N * N))

    vmem = pl.BlockSpec(memory_space=pltpu.MemorySpace.VMEM)
    smem = pl.BlockSpec(memory_space=pltpu.MemorySpace.SMEM)

    out_padded = pl.pallas_call(
        fused_gcnii_kernel,
        out_shape=jax.ShapeDtypeStruct((N, Cp), jnp.float32),
        in_specs=[smem] + [vmem] * 8,
        out_specs=vmem,
        cost_estimate=pl.CostEstimate(flops=flops,
                                      transcendentals=N * Cp + N,
                                      bytes_accessed=bytes_accessed),
    )(coefs, x.astype(f32), w_in, b_in, w1s, w2s, a_b, w_out, b_out)

    return out_padded[:, :C]


# ----------------------------------------------------------------------------
# GCN normalization (gcn_norm) — glue, plain JAX (dense adjacency)
# ----------------------------------------------------------------------------

def build_norm_adj(edge_index, num_nodes):
    """Dense D^{-1/2}(A + I)D^{-1/2}; A_hat[i, j] = weight of edge j->i."""
    row, col = edge_index[0], edge_index[1]     # row = source j, col = target i
    loops = jnp.arange(num_nodes, dtype=row.dtype)
    row = jnp.concatenate([row, loops])
    col = jnp.concatenate([col, loops])
    w = jnp.ones(row.shape[0], jnp.float32)
    deg = jnp.zeros(num_nodes, jnp.float32).at[col].add(w)
    deg_inv_sqrt = jnp.where(deg > 0, 1.0 / jnp.sqrt(deg), 0.0)
    norm_w = deg_inv_sqrt[row] * w * deg_inv_sqrt[col]
    a_hat = jnp.zeros((num_nodes, num_nodes), jnp.float32).at[col, row].add(norm_w)
    return a_hat


# ----------------------------------------------------------------------------
# Deterministic parameter init (matches PyTorch Linear / PyG glorot)
# ----------------------------------------------------------------------------

def glorot(key, shape):
    fan_in, fan_out = shape[-2], shape[-1]
    std = math.sqrt(6.0 / (fan_in + fan_out))
    return jax.random.uniform(key, shape, jnp.float32, -std, std)


def linear_init(key, fan_in, fan_out):
    kw, kb = jax.random.split(key)
    bound = 1.0 / math.sqrt(fan_in)
    w = jax.random.uniform(kw, (fan_in, fan_out), jnp.float32, -bound, bound)
    b = jax.random.uniform(kb, (1, fan_out), jnp.float32, -bound, bound)
    return w, b


def init_params(key, num_features, hidden, num_classes):
    k_in, k_out, k1, k2 = jax.random.split(key, 4)
    w_in, b_in = linear_init(k_in, num_features, hidden)
    w_out, b_out = linear_init(k_out, hidden, num_classes)
    w1s = glorot(k1, (N_LAYERS, hidden, hidden))
    w2s = glorot(k2, (N_LAYERS, hidden, hidden))
    return {"w_in": w_in, "b_in": b_in, "w_out": w_out, "b_out": b_out,
            "w1s": w1s, "w2s": w2s}


# ----------------------------------------------------------------------------
# Main
# ----------------------------------------------------------------------------

if __name__ == "__main__":
    NUM_NODES = 64
    NUM_FEATURES = 16
    HIDDEN = 64          # module default hidden_channels (used unpadded)
    NUM_CLASSES = 7

    key = jax.random.PRNGKey(0)
    k_x, k_p = jax.random.split(key)

    # node features [N, F]
    x = jax.random.normal(k_x, (NUM_NODES, NUM_FEATURES), jnp.float32)

    # deterministic graph: ring + chords (no self loops; self loops added in norm)
    src = jnp.arange(NUM_NODES, dtype=jnp.int32)
    dst = (src + 1) % NUM_NODES
    src2 = jnp.arange(NUM_NODES, dtype=jnp.int32)
    dst2 = (src2 + 7) % NUM_NODES
    edge_index = jnp.stack([
        jnp.concatenate([src, dst, src2]),
        jnp.concatenate([dst, src, dst2]),
    ])

    a_hat = build_norm_adj(edge_index, NUM_NODES)
    params = init_params(k_p, NUM_FEATURES, HIDDEN, NUM_CLASSES)

    out = gcnii_forward(params, x, a_hat)
    out = jax.block_until_ready(out)

    assert out.shape == (NUM_NODES, NUM_CLASSES)
    # rows of log_softmax should exponentiate-sum to ~1
    assert bool(jnp.allclose(jnp.exp(out).sum(axis=1), 1.0, atol=1e-4))
    print("KERNEL_OK")
</pallas_src>

<mosaic_0001>
module attributes {stable_mosaic.version = 11 : i64} {
  func.func @fused_gcnii_kernel(%arg0: memref<3x64xf32, #tpu.memory_space<smem>>, %arg1: memref<64x16xf32, #tpu.memory_space<vmem>>, %arg2: memref<16x64xf32, #tpu.memory_space<vmem>>, %arg3: memref<1x64xf32, #tpu.memory_space<vmem>>, %arg4: memref<64x64x64xbf16, #tpu.memory_space<vmem>>, %arg5: memref<64x64x64xbf16, #tpu.memory_space<vmem>>, %arg6: memref<64x64xbf16, #tpu.memory_space<vmem>>, %arg7: memref<64x128xf32, #tpu.memory_space<vmem>>, %arg8: memref<1x128xf32, #tpu.memory_space<vmem>>, %arg9: memref<64x128xf32, #tpu.memory_space<vmem>>) attributes {dimension_semantics = [], scalar_prefetch = 0 : i64, scratch_operands = 0 : i64, tpu.core_type = #tpu.core_type<tc>} {
    %c0 = arith.constant 0 : index
    %c0_0 = arith.constant 0 : index
    %0 = vector.load %arg1[%c0, %c0_0] : memref<64x16xf32, #tpu.memory_space<vmem>>, vector<64x16xf32>
    %c0_1 = arith.constant 0 : index
    %c0_2 = arith.constant 0 : index
    %1 = vector.load %arg2[%c0_1, %c0_2] : memref<16x64xf32, #tpu.memory_space<vmem>>, vector<16x64xf32>
    %cst = arith.constant dense<0.000000e+00> : vector<64x64xf32>
    %2 = tpu.matmul %0, %1, %cst {dimension_numbers = #tpu.dot_dimension_numbers<[1], [0], [0], [1], [0, 0, 1, 1], [], []>} : vector<64x16xf32>, vector<16x64xf32>, vector<64x64xf32> -> vector<64x64xf32>
    %c0_3 = arith.constant 0 : index
    %c0_4 = arith.constant 0 : index
    %3 = vector.load %arg3[%c0_3, %c0_4] : memref<1x64xf32, #tpu.memory_space<vmem>>, vector<1x64xf32>
    %4 = vector.broadcast %3 : vector<1x64xf32> to vector<64x64xf32>
    %5 = arith.addf %2, %4 : vector<64x64xf32>
    %cst_5 = arith.constant 0.000000e+00 : f32
    %6 = vector.broadcast %cst_5 : f32 to vector<64x64xf32>
    %7 = arith.maximumf %5, %6 : vector<64x64xf32>
    %c0_6 = arith.constant 0 : index
    %c0_7 = arith.constant 0 : index
    %8 = vector.load %arg6[%c0_6, %c0_7] : memref<64x64xbf16, #tpu.memory_space<vmem>>, vector<64x64xbf16>
    %9 = arith.truncf %7 : vector<64x64xf32> to vector<64x64xbf16>
    %c0_i32 = arith.constant 0 : i32
    %c64_i32 = arith.constant 64 : i32
    %10 = arith.addi %c0_i32, %c64_i32 : i32
    %c1_i32 = arith.constant 1 : i32
    %11 = scf.for %arg10 = %c0_i32 to %10 step %c1_i32 iter_args(%arg11 = %7) -> (vector<64x64xf32>)  : i32 {
      %c0_18 = arith.constant 0 : index
      %28 = arith.index_cast %arg10 : i32 to index
      %29 = memref.load %arg0[%c0_18, %28] : memref<3x64xf32, #tpu.memory_space<smem>>
      %c1 = arith.constant 1 : index
      %30 = arith.index_cast %arg10 : i32 to index
      %31 = memref.load %arg0[%c1, %30] : memref<3x64xf32, #tpu.memory_space<smem>>
      %c2 = arith.constant 2 : index
      %32 = arith.index_cast %arg10 : i32 to index
      %33 = memref.load %arg0[%c2, %32] : memref<3x64xf32, #tpu.memory_space<smem>>
      %34 = arith.truncf %arg11 : vector<64x64xf32> to vector<64x64xbf16>
      %35 = arith.index_cast %arg10 : i32 to index
      %c0_19 = arith.constant 0 : index
      %c0_20 = arith.constant 0 : index
      %36 = vector.load %arg4[%35, %c0_19, %c0_20] : memref<64x64x64xbf16, #tpu.memory_space<vmem>>, vector<1x64x64xbf16>
      %37 = vector.shape_cast %36 : vector<1x64x64xbf16> to vector<64x64xbf16>
      %cst_21 = arith.constant dense<0.000000e+00> : vector<64x64xf32>
      %38 = tpu.matmul %34, %37, %cst_21 {dimension_numbers = #tpu.dot_dimension_numbers<[1], [0], [0], [1], [0, 0, 1, 1], [], []>} : vector<64x64xbf16>, vector<64x64xbf16>, vector<64x64xf32> -> vector<64x64xf32>
      %39 = arith.index_cast %arg10 : i32 to index
      %c0_22 = arith.constant 0 : index
      %c0_23 = arith.constant 0 : index
      %40 = vector.load %arg5[%39, %c0_22, %c0_23] : memref<64x64x64xbf16, #tpu.memory_space<vmem>>, vector<1x64x64xbf16>
      %41 = vector.shape_cast %40 : vector<1x64x64xbf16> to vector<64x64xbf16>
      %cst_24 = arith.constant dense<0.000000e+00> : vector<64x64xf32>
      %42 = tpu.matmul %9, %41, %cst_24 {dimension_numbers = #tpu.dot_dimension_numbers<[1], [0], [0], [1], [0, 0, 1, 1], [], []>} : vector<64x64xbf16>, vector<64x64xbf16>, vector<64x64xf32> -> vector<64x64xf32>
      %43 = vector.broadcast %29 : f32 to vector<64x64xf32>
      %44 = arith.mulf %43, %arg11 : vector<64x64xf32>
      %45 = vector.broadcast %31 : f32 to vector<64x64xf32>
      %46 = arith.mulf %45, %38 : vector<64x64xf32>
      %47 = arith.addf %44, %46 : vector<64x64xf32>
      %48 = vector.broadcast %33 : f32 to vector<64x64xf32>
      %49 = arith.mulf %48, %7 : vector<64x64xf32>
      %50 = vector.broadcast %31 : f32 to vector<64x64xf32>
      %51 = arith.mulf %50, %42 : vector<64x64xf32>
      %52 = arith.addf %49, %51 : vector<64x64xf32>
      %53 = arith.truncf %47 : vector<64x64xf32> to vector<64x64xbf16>
      %cst_25 = arith.constant dense<0.000000e+00> : vector<64x64xf32>
      %54 = tpu.matmul %8, %53, %cst_25 {dimension_numbers = #tpu.dot_dimension_numbers<[1], [0], [0], [1], [0, 0, 1, 1], [], []>} : vector<64x64xbf16>, vector<64x64xbf16>, vector<64x64xf32> -> vector<64x64xf32>
      %55 = arith.addf %54, %52 : vector<64x64xf32>
      %cst_26 = arith.constant 0.000000e+00 : f32
      %56 = vector.broadcast %cst_26 : f32 to vector<64x64xf32>
      %57 = arith.maximumf %55, %56 : vector<64x64xf32>
      scf.yield %57 : vector<64x64xf32>
    }
    %c64_i32_8 = arith.constant 64 : i32
    %c0_9 = arith.constant 0 : index
    %c0_10 = arith.constant 0 : index
    %12 = vector.load %arg7[%c0_9, %c0_10] : memref<64x128xf32, #tpu.memory_space<vmem>>, vector<64x128xf32>
    %cst_11 = arith.constant dense<0.000000e+00> : vector<64x128xf32>
    %13 = tpu.matmul %11, %12, %cst_11 {dimension_numbers = #tpu.dot_dimension_numbers<[1], [0], [0], [1], [0, 0, 1, 1], [], []>} : vector<64x64xf32>, vector<64x128xf32>, vector<64x128xf32> -> vector<64x128xf32>
    %c0_12 = arith.constant 0 : index
    %c0_13 = arith.constant 0 : index
    %14 = vector.load %arg8[%c0_12, %c0_13] : memref<1x128xf32, #tpu.memory_space<vmem>>, vector<1x128xf32>
    %15 = vector.broadcast %14 : vector<1x128xf32> to vector<64x128xf32>
    %16 = arith.addf %13, %15 : vector<64x128xf32>
    %cst_14 = arith.constant dense<0xFF800000> : vector<64xf32>
    %17 = vector.multi_reduction <maximumf>, %16, %cst_14 [1] : vector<64x128xf32> to vector<64xf32>
    %18 = vector.shape_cast %17 : vector<64xf32> to vector<64x1xf32>
    %19 = vector.broadcast %18 : vector<64x1xf32> to vector<64x128xf32>
    %20 = arith.subf %16, %19 : vector<64x128xf32>
    %21 = math.exp %20 : vector<64x128xf32>
    %cst_15 = arith.constant dense<0.000000e+00> : vector<64xf32>
    %22 = vector.multi_reduction <add>, %21, %cst_15 [1] : vector<64x128xf32> to vector<64xf32>
    %23 = vector.shape_cast %22 : vector<64xf32> to vector<64x1xf32>
    %24 = math.log %23 : vector<64x1xf32>
    %25 = vector.broadcast %24 : vector<64x1xf32> to vector<64x128xf32>
    %26 = arith.subf %20, %25 : vector<64x128xf32>
    %c0_16 = arith.constant 0 : index
    %c0_17 = arith.constant 0 : index
    %27 = vector.load %arg9[%c0_16, %c0_17] : memref<64x128xf32, #tpu.memory_space<vmem>>, vector<64x128xf32>
    tpu.vector_store %arg9[%c0_16, %c0_17], %26 {strides = array<i32>} : memref<64x128xf32, #tpu.memory_space<vmem>>, vector<64x128xf32>,
    return
  }
}

</mosaic_0001>

<llo_original>
// kernel: gcnii_forward.1
$region0: #{gcnii_forward.1}
  #allocation0 [shape = 'u32[]', space=smem, size = 0x4, offset = 0x4, fixed_abs, tag = 'smem constant byte address 0x4 - core index']
  #allocation1 [shape = 'u32[144,128]{1,0:T(1,128)}', space=vmem, size = 0x12000, scoped, tag = 'internal scratch']
  %s0 = inlined_call_operand.vmem [shape: f32[3,64], index: 0, kind: input, shape index: {}]
  %s1 = inlined_call_operand.vmem [shape: f32[64,16], index: 1, kind: input, shape index: {}]
  %s2 = inlined_call_operand.vmem [shape: f32[16,64], index: 2, kind: input, shape index: {}]
  %s3 = inlined_call_operand.vmem [shape: f32[1,64], index: 3, kind: input, shape index: {}]
  %s4 = inlined_call_operand.vmem [shape: bf16[64,64,64], index: 4, kind: input, shape index: {}]
  %s5 = inlined_call_operand.vmem [shape: bf16[64,64,64], index: 5, kind: input, shape index: {}]
  %s6 = inlined_call_operand.vmem [shape: bf16[64,64], index: 6, kind: input, shape index: {}]
  %s7 = inlined_call_operand.vmem [shape: f32[64,128], index: 7, kind: input, shape index: {}]
  %s8 = inlined_call_operand.vmem [shape: f32[1,128], index: 8, kind: input, shape index: {}]
  %s9 = inlined_call_operand.vmem [shape: f32[64,128], index: 9, kind: output, shape index: {}]
  %s10 = sld [smem:[#allocation0]]
  $region57: #{gcnii_forward.1} parent=0
    _
  %s12 = ssub.s32 1, %s10
  %s13 = scalar_select 0, %s12, %s10
  $region1: #{gcnii_forward.1} parent=0
    #allocation2 [shape = 'u8[2048]{0}', space=smem, size = 0x800, scoped, tag = 'input window, operand 0, single buffered']
    #allocation3 [shape = 's32[1]{0}', space=sflag, size = 0x4, scoped, tag = 'scoped memory for gcnii_forward.1']
    %14 = vsyncpa [#allocation3], 0
    // Predicated region
    $region2: #{gcnii_forward.1} parent=1 // pred_check
      _
    $region3: #{gcnii_forward.1} parent=1 // pred_check_branch
      %16 = sbr.rel (0) target = $region5
    $region4: #{gcnii_forward.1} parent=1 // pred_region
      %s18 = ssub.s32 64, 64
      %19 = vsyncadd [#allocation3], %s18
      %s21 = sshll.u32 %s0, 4
      %s22 = int_to_ptr.vmem [resolvable:$true] %s21
      %24 = dma.vmem_to_smem %s22, 64, [#allocation2], [#allocation3]
    $region5: #{gcnii_forward.1} parent=1 // pred_fallthru
      _
    // Predicated region
    $region6: #{gcnii_forward.1} parent=1 // pred_check
      _
    $region7: #{gcnii_forward.1} parent=1 // pred_check_branch
      %26 = sbr.rel (0) target = $region9
    $region8: #{gcnii_forward.1} parent=1 // pred_region
      _
    $region9: #{gcnii_forward.1} parent=1 // pred_fallthru
      _
    // Predicated region
    $region10: #{gcnii_forward.1} parent=1 // pred_check
      _
    $region11: #{gcnii_forward.1} parent=1 // pred_check_branch
      %28 = sbr.rel (0) target = $region13
    $region12: #{gcnii_forward.1} parent=1 // pred_region
      _
    $region13: #{gcnii_forward.1} parent=1 // pred_fallthru
      _
    // Predicated region
    $region14: #{gcnii_forward.1} parent=1 // pred_check
      _
    $region15: #{gcnii_forward.1} parent=1 // pred_check_branch
      %30 = sbr.rel (0) target = $region17
    $region16: #{gcnii_forward.1} parent=1 // pred_region
      _
    $region17: #{gcnii_forward.1} parent=1 // pred_fallthru
      _
    // Predicated region
    $region18: #{gcnii_forward.1} parent=1 // pred_check
      _
    $region19: #{gcnii_forward.1} parent=1 // pred_check_branch
      %32 = sbr.rel (0) target = $region21
    $region20: #{gcnii_forward.1} parent=1 // pred_region
      _
    $region21: #{gcnii_forward.1} parent=1 // pred_fallthru
      _
    // Predicated region
    $region22: #{gcnii_forward.1} parent=1 // pred_check
      _
    $region23: #{gcnii_forward.1} parent=1 // pred_check_branch
      %34 = sbr.rel (0) target = $region25
    $region24: #{gcnii_forward.1} parent=1 // pred_region
      _
    $region25: #{gcnii_forward.1} parent=1 // pred_fallthru
      _
    // Predicated region
    $region26: #{gcnii_forward.1} parent=1 // pred_check
      _
    $region27: #{gcnii_forward.1} parent=1 // pred_check_branch
      %36 = sbr.rel (0) target = $region29
    $region28: #{gcnii_forward.1} parent=1 // pred_region
      _
    $region29: #{gcnii_forward.1} parent=1 // pred_fallthru
      _
    // Predicated region
    $region30: #{gcnii_forward.1} parent=1 // pred_check
      _
    $region31: #{gcnii_forward.1} parent=1 // pred_check_branch
      %38 = sbr.rel (0) target = $region33
    $region32: #{gcnii_forward.1} parent=1 // pred_region
      _
    $region33: #{gcnii_forward.1} parent=1 // pred_fallthru
      _
    // Predicated region
    $region34: #{gcnii_forward.1} parent=1 // pred_check
      _
    $region35: #{gcnii_forward.1} parent=1 // pred_check_branch
      %40 = sbr.rel (0) target = $region37
    $region36: #{gcnii_forward.1} parent=1 // pred_region
      _
    $region37: #{gcnii_forward.1} parent=1 // pred_fallthru
      _
    // Predicated region
    $region38: #{gcnii_forward.1} parent=1 // pred_check
      _
    $region39: #{gcnii_forward.1} parent=1 // pred_check_branch
      %42 = sbr.rel (0) target = $region41
    $region40: #{gcnii_forward.1} parent=1 // pred_region
      %43 = dma.done [#allocation3], 64
    $region41: #{gcnii_forward.1} parent=1 // pred_fallthru
      _
    %44 = sfence
    %v46 = vld [vmem:[%s1] sm:$0xff]
    %v47 = vld [vmem:[%s1 + $0x8] sm:$0xff]
    %v48 = vld [vmem:[%s1 + $0x10] sm:$0xff]
    %v49 = vld [vmem:[%s1 + $0x18] sm:$0xff]
    %v50 = vld [vmem:[%s1 + $0x20] sm:$0xff]
    %v51 = vld [vmem:[%s1 + $0x28] sm:$0xff]
    %v52 = vld [vmem:[%s1 + $0x30] sm:$0xff]
    %v53 = vld [vmem:[%s1 + $0x38] sm:$0xff]
    %v54 = vld [vmem:[%s2] sm:$0xff]
    %v55 = vld [vmem:[%s2 + $0x8] sm:$0xff]
    %v56 = vld [vmem:[%s3] sm:$0x1]
    %v58 = vlaneseq
    %v59 = vshrl.u32 %v58, 7
    %v60 = vsub.s32 0, %v59
    %v61 = vrot.slane %v56, %v60
    %vm63 = vcmask 130048
    %v65 = vsel %vm63, %v46, 0
    %v68 = vsel %vm63, %v47, 0
    %v71 = vsel %vm63, %v48, 0
    %v74 = vsel %vm63, %v49, 0
    %v77 = vsel %vm63, %v50, 0
    %v80 = vsel %vm63, %v51, 0
    %v83 = vsel %vm63, %v52, 0
    %v86 = vsel %vm63, %v53, 0
    %88 = vmatprep.subr.mxu0 0.0
    %89 = vmatpush1.msra.mxu0 %v54
    %90 = vmatprep.subr.mxu0 0.0
    %91 = vmatpush1.msra.mxu0 %v55
    %92 = vmatprep.subr.mxu0 0.0
    %93 = vmatpush1.msra.mxu0 0.0
    %94 = vmatprep.subr.mxu0 0.0
    %95 = vmatpush1.msra.mxu0 0.0
    %96 = vmatprep.subr.mxu0 0.0
    %97 = vmatpush1.msra.mxu0 0.0
    %98 = vmatprep.subr.mxu0 0.0
    %99 = vmatpush1.msra.mxu0 0.0
    %100 = vmatprep.subr.mxu0 0.0
    %101 = vmatpush1.msra.mxu0 0.0
    %102 = vmatprep.subr.mxu0 0.0
    %103 = vmatpush1.msra.mxu0 0.0
    %104 = vmatprep.subr.mxu0 0.0
    %105 = vmatpush1.msra.mxu0 0.0
    %106 = vmatprep.subr.mxu0 0.0
    %107 = vmatpush1.msra.mxu0 0.0
    %108 = vmatprep.subr.mxu0 0.0
    %109 = vmatpush1.msra.mxu0 0.0
    %110 = vmatprep.subr.mxu0 0.0
    %111 = vmatpush1.msra.mxu0 0.0
    %112 = vmatprep.subr.mxu0 0.0
    %113 = vmatpush1.msra.mxu0 0.0
    %114 = vmatprep.subr.mxu0 0.0
    %115 = vmatpush1.msra.mxu0 0.0
    %116 = vmatprep.subr.mxu0 0.0
    %117 = vmatpush1.msra.mxu0 0.0
    %118 = vmatprep.subr.mxu0 0.0
    %119 = vmatpush1.msra.mxu0 0.0
    %120 = vmatprep.subr.mxu0 0.0
    %121 = vmatpush1.msra.mxu0 0.0
    %122 = vmatprep.subr.mxu0 0.0
    %123 = vmatpush1.msra.mxu0 0.0
    %124 = vmatprep.subr.mxu0 0.0
    %125 = vmatpush1.msra.mxu0 0.0
    %126 = vmatprep.subr.mxu0 0.0
    %127 = vmatpush1.msra.mxu0 0.0
    %128 = vmatprep.subr.mxu0 0.0
    %129 = vmatpush1.msra.mxu0 0.0
    %130 = vmatprep.subr.mxu0 0.0
    %131 = vmatpush1.msra.mxu0 0.0
    %132 = vmatprep.subr.mxu0 0.0
    %133 = vmatpush1.msra.mxu0 0.0
    %134 = vmatprep.subr.mxu0 0.0
    %135 = vmatpush1.msra.mxu0 0.0
    %136 = vmatprep.subr.mxu0 0.0
    %137 = vmatpush1.msra.mxu0 0.0
    %138 = vmatprep.subr.mxu0 0.0
    %139 = vmatpush1.msra.mxu0 0.0
    %140 = vmatprep.subr.mxu0 0.0
    %141 = vmatpush1.msra.mxu0 0.0
    %142 = vmatprep.subr.mxu0 0.0
    %143 = vmatpush1.msra.mxu0 0.0
    %144 = vmatprep.subr.mxu0 0.0
    %145 = vmatpush1.msra.mxu0 0.0
    %146 = vmatprep.subr.mxu0 0.0
    %147 = vmatpush1.msra.mxu0 0.0
    %148 = vmatprep.subr.mxu0 0.0
    %149 = vmatpush1.msra.mxu0 0.0
    %150 = vmatprep.subr.mxu0 0.0
    %151 = vmatpush1.msra.mxu0 0.0
    %152 = vmatprep.mubr.f32.mxu0 0.0
    %153 = vmatmul.mubr.f32.gmra.mrb[0].mxu0 %v65
    %v154 = vpop.f32.mrb[0].mxu0
    %v155 = vadd.f32 %v61, %v154
    %v156 = vpop.f32.mrb[0].mxu0
    %157 = vmatprep.mubr.f32.mxu0 0.0
    %158 = vmatmul.mubr.f32.gmra.mrb[0].mxu0 %v68
    %v159 = vpop.f32.mrb[0].mxu0
    %v160 = vadd.f32 %v61, %v159
    %v161 = vpop.f32.mrb[0].mxu0
    %162 = vmatprep.mubr.f32.mxu0 0.0
    %163 = vmatmul.mubr.f32.gmra.mrb[0].mxu0 %v71
    %v164 = vpop.f32.mrb[0].mxu0
    %v165 = vadd.f32 %v61, %v164
    %v166 = vpop.f32.mrb[0].mxu0
    %167 = vmatprep.mubr.f32.mxu0 0.0
    %168 = vmatmul.mubr.f32.gmra.mrb[0].mxu0 %v74
    %v169 = vpop.f32.mrb[0].mxu0
    %v170 = vadd.f32 %v61, %v169
    %v171 = vpop.f32.mrb[0].mxu0
    %172 = vmatprep.mubr.f32.mxu0 0.0
    %173 = vmatmul.mubr.f32.gmra.mrb[0].mxu0 %v77
    %v174 = vpop.f32.mrb[0].mxu0
    %v175 = vadd.f32 %v61, %v174
    %v176 = vpop.f32.mrb[0].mxu0
    %177 = vmatprep.mubr.f32.mxu0 0.0
    %178 = vmatmul.mubr.f32.gmra.mrb[0].mxu0 %v80
    %v179 = vpop.f32.mrb[0].mxu0
    %v180 = vadd.f32 %v61, %v179
    %v181 = vpop.f32.mrb[0].mxu0
    %182 = vmatprep.mubr.f32.mxu0 0.0
    %183 = vmatmul.mubr.f32.gmra.mrb[0].mxu0 %v83
    %v184 = vpop.f32.mrb[0].mxu0
    %v185 = vadd.f32 %v61, %v184
    %v186 = vpop.f32.mrb[0].mxu0
    %187 = vmatprep.mubr.f32.mxu0 0.0
    %188 = vmatmul.mubr.f32.gmra.mrb[0].mxu0 %v86
    %v189 = vpop.f32.mrb[0].mxu0
    %v190 = vadd.f32 %v61, %v189
    %v191 = vpop.f32.mrb[0].mxu0
    %192 = vdwg.mxu0
    %v193 = vmax.f32 %v155, 0.0
    %v194 = vmax.f32 %v160, 0.0
    %v195 = vmax.f32 %v165, 0.0
    %v196 = vmax.f32 %v170, 0.0
    %v197 = vmax.f32 %v175, 0.0
    %v198 = vmax.f32 %v180, 0.0
    %v199 = vmax.f32 %v185, 0.0
    %v200 = vmax.f32 %v190, 0.0
    %v201 = vld [vmem:[%s6] sm:$0xf]
    %v202 = vld [vmem:[%s6 + $0x4] sm:$0xf]
    %v203 = vld [vmem:[%s6 + $0x8] sm:$0xf]
    %v204 = vld [vmem:[%s6 + $0xc] sm:$0xf]
    %v205 = vld [vmem:[%s6 + $0x10] sm:$0xf]
    %v206 = vld [vmem:[%s6 + $0x14] sm:$0xf]
    %v207 = vld [vmem:[%s6 + $0x18] sm:$0xf]
    %v208 = vld [vmem:[%s6 + $0x1c] sm:$0xf]
    %v209 = vpack.c.bf16 %v194, %v193
    %v210 = vpack.c.bf16 %v196, %v195
    %v211 = vpack.c.bf16 %v198, %v197
    %v212 = vpack.c.bf16 %v200, %v199
    loop: start=0, step=1, limit=64
    $region42: #{gcnii_forward.1} parent=1 // loop_pre_header
      _
    $region43: #{gcnii_forward.1} parent=1 // loop_header
      %s214 = sphi 0, %s218
      %p215 = scmp.ge.s32.totalorder %s214, 64
      %v219 = vphi %v193, %v620
      %v220 = vphi %v194, %v621
      %v221 = vphi %v195, %v622
      %v222 = vphi %v196, %v623
      %v223 = vphi %v197, %v624
      %v224 = vphi %v198, %v625
      %v225 = vphi %v199, %v626
      %v226 = vphi %v200, %v627
    $region44: #{gcnii_forward.1} parent=1 // loop_header_branch
      %217 = sbr.rel (%p215) target = $region48
    $region45: #{gcnii_forward.1} parent=1 // loop_body
      %s227 = sld [smem:[#allocation2 + %s214]]
      %s228 = sshra.s32 %s214, 7
      %s229 = sand.u32 %s214, 127
      %s230 = sadd.s32 %s228, 1
      %s231 = smul.u32 %s230, 128
      %s232 = sshra.s32 %s214, 7
      %s233 = sand.u32 %s214, 127
      %s234 = sadd.s32 %s231, %s233
      %s235 = sld [smem:[#allocation2 + %s234]]
      %s236 = sadd.s32 %s228, 2
      %s237 = smul.u32 %s236, 128
      %s238 = sadd.s32 %s237, %s233
      %s239 = sld [smem:[#allocation2 + %s238]]
      %v240 = vpack.c.bf16 %v220, %v219
      %v241 = vpack.c.bf16 %v222, %v221
      %v242 = vpack.c.bf16 %v224, %v223
      %v243 = vpack.c.bf16 %v226, %v225
      %s244 = smul.u32 %s214, 8
      %s245 = smul.addr %s244, 4
      %s246 = scalar_lea.vmem %s4, %s245
      %v247 = vld [vmem:[%s246] sm:$0xf]
      %v248 = vld [vmem:[%s246 + $0x4] sm:$0xf]
      %v249 = vld [vmem:[%s246 + $0x8] sm:$0xf]
      %v250 = vld [vmem:[%s246 + $0xc] sm:$0xf]
      %v251 = vld [vmem:[%s246 + $0x10] sm:$0xf]
      %v252 = vld [vmem:[%s246 + $0x14] sm:$0xf]
      %v253 = vld [vmem:[%s246 + $0x18] sm:$0xf]
      %v254 = vld [vmem:[%s246 + $0x1c] sm:$0xf]
      %v263 = vunpack.c.l.b16 %v247
      %v264 = vunpack.c.l.b16 %v248
      %v265 = vunpack.c.l.b16 %v249
      %v266 = vunpack.c.l.b16 %v250
      %v267 = vunpack.c.l.b16 %v251
      %v268 = vunpack.c.l.b16 %v252
      %v269 = vunpack.c.l.b16 %v253
      %v270 = vunpack.c.l.b16 %v254
      %v271 = vpack.c.b16 %v264, %v263
      %v272 = vpack.c.b16 %v266, %v265
      %v273 = vpack.c.b16 %v268, %v267
      %v274 = vpack.c.b16 %v270, %v269
      %vm279 = vcmask 523264
      %v281 = vsel %vm279, %v240, 0
      %v284 = vsel %vm279, %v241, 0
      %v287 = vsel %vm279, %v242, 0
      %v290 = vsel %vm279, %v243, 0
      %292 = vmatprep.subr.bf16.mxu0 0
      %293 = vmatpush1.bf16.msra.mxu0 %v271
      %294 = vmatprep.subr.bf16.mxu0 0
      %295 = vmatpush1.bf16.msra.mxu0 %v272
      %296 = vmatprep.subr.bf16.mxu0 0
      %297 = vmatpush1.bf16.msra.mxu0 %v273
      %298 = vmatprep.subr.bf16.mxu0 0
      %299 = vmatpush1.bf16.msra.mxu0 %v274
      %300 = vmatprep.subr.bf16.mxu0 0
      %301 = vmatpush1.bf16.msra.mxu0 0
      %302 = vmatprep.subr.bf16.mxu0 0
      %303 = vmatpush1.bf16.msra.mxu0 0
      %304 = vmatprep.subr.bf16.mxu0 0
      %305 = vmatpush1.bf16.msra.mxu0 0
      %306 = vmatprep.subr.bf16.mxu0 0
      %307 = vmatpush1.bf16.msra.mxu0 0
      %308 = vmatprep.subr.bf16.mxu0 0
      %309 = vmatpush1.bf16.msra.mxu0 0
      %310 = vmatprep.subr.bf16.mxu0 0
      %311 = vmatpush1.bf16.msra.mxu0 0
      %312 = vmatprep.subr.bf16.mxu0 0
      %313 = vmatpush1.bf16.msra.mxu0 0
      %314 = vmatprep.subr.bf16.mxu0 0
      %315 = vmatpush1.bf16.msra.mxu0 0
      %316 = vmatprep.subr.bf16.mxu0 0
      %317 = vmatpush1.bf16.msra.mxu0 0
      %318 = vmatprep.subr.bf16.mxu0 0
      %319 = vmatpush1.bf16.msra.mxu0 0
      %320 = vmatprep.subr.bf16.mxu0 0
      %321 = vmatpush1.bf16.msra.mxu0 0
      %322 = vmatprep.subr.bf16.mxu0 0
      %323 = vmatpush1.bf16.msra.mxu0 0
      %324 = vmatprep.mubr.bf16.mxu0 0
      %325 = vmatmul.mubr.bf16.gmra.mrb[0].mxu0 %v281
      %v326 = vpop.f32.mrb[0].mxu0
      %v327 = vadd.f32 0.0, %v326
      %v328 = vpop.f32.mrb[0].mxu0
      %v329 = vpop.f32.mrb[0].mxu0
      %v330 = vadd.f32 0.0, %v329
      %v331 = vpop.f32.mrb[0].mxu0
      %332 = vmatprep.mubr.bf16.mxu0 0
      %333 = vmatmul.mubr.bf16.gmra.mrb[0].mxu0 %v284
      %v334 = vpop.f32.mrb[0].mxu0
      %v335 = vadd.f32 0.0, %v334
      %v336 = vpop.f32.mrb[0].mxu0
      %v337 = vpop.f32.mrb[0].mxu0
      %v338 = vadd.f32 0.0, %v337
      %v339 = vpop.f32.mrb[0].mxu0
      %340 = vmatprep.mubr.bf16.mxu0 0
      %341 = vmatmul.mubr.bf16.gmra.mrb[0].mxu0 %v287
      %v342 = vpop.f32.mrb[0].mxu0
      %v343 = vadd.f32 0.0, %v342
      %v344 = vpop.f32.mrb[0].mxu0
      %v345 = vpop.f32.mrb[0].mxu0
      %v346 = vadd.f32 0.0, %v345
      %v347 = vpop.f32.mrb[0].mxu0
      %348 = vmatprep.mubr.bf16.mxu0 0
      %349 = vmatmul.mubr.bf16.gmra.mrb[0].mxu0 %v290
      %v350 = vpop.f32.mrb[0].mxu0
      %v351 = vadd.f32 0.0, %v350
      %v352 = vpop.f32.mrb[0].mxu0
      %v353 = vpop.f32.mrb[0].mxu0
      %v354 = vadd.f32 0.0, %v353
      %v355 = vpop.f32.mrb[0].mxu0
      %356 = vdwg.mxu0
      %s357 = smul.addr %s244, 4
      %s358 = scalar_lea.vmem %s5, %s357
      %v359 = vld [vmem:[%s358] sm:$0xf]
      %v360 = vld [vmem:[%s358 + $0x4] sm:$0xf]
      %v361 = vld [vmem:[%s358 + $0x8] sm:$0xf]
      %v362 = vld [vmem:[%s358 + $0xc] sm:$0xf]
      %v363 = vld [vmem:[%s358 + $0x10] sm:$0xf]
      %v364 = vld [vmem:[%s358 + $0x14] sm:$0xf]
      %v365 = vld [vmem:[%s358 + $0x18] sm:$0xf]
      %v366 = vld [vmem:[%s358 + $0x1c] sm:$0xf]
      %v375 = vunpack.c.l.b16 %v359
      %v376 = vunpack.c.l.b16 %v360
      %v377 = vunpack.c.l.b16 %v361
      %v378 = vunpack.c.l.b16 %v362
      %v379 = vunpack.c.l.b16 %v363
      %v380 = vunpack.c.l.b16 %v364
      %v381 = vunpack.c.l.b16 %v365
      %v382 = vunpack.c.l.b16 %v366
      %v383 = vpack.c.b16 %v376, %v375
      %v384 = vpack.c.b16 %v378, %v377
      %v385 = vpack.c.b16 %v380, %v379
      %v386 = vpack.c.b16 %v382, %v381
      %v392 = vsel %vm279, %v209, 0
      %v395 = vsel %vm279, %v210, 0
      %v398 = vsel %vm279, %v211, 0
      %v401 = vsel %vm279, %v212, 0
      %403 = vmatprep.subr.bf16.mxu0 0
      %404 = vmatpush1.bf16.msra.mxu0 %v383
      %405 = vmatprep.subr.bf16.mxu0 0
      %406 = vmatpush1.bf16.msra.mxu0 %v384
      %407 = vmatprep.subr.bf16.mxu0 0
      %408 = vmatpush1.bf16.msra.mxu0 %v385
      %409 = vmatprep.subr.bf16.mxu0 0
      %410 = vmatpush1.bf16.msra.mxu0 %v386
      %411 = vmatprep.subr.bf16.mxu0 0
      %412 = vmatpush1.bf16.msra.mxu0 0
      %413 = vmatprep.subr.bf16.mxu0 0
      %414 = vmatpush1.bf16.msra.mxu0 0
      %415 = vmatprep.subr.bf16.mxu0 0
      %416 = vmatpush1.bf16.msra.mxu0 0
      %417 = vmatprep.subr.bf16.mxu0 0
      %418 = vmatpush1.bf16.msra.mxu0 0
      %419 = vmatprep.subr.bf16.mxu0 0
      %420 = vmatpush1.bf16.msra.mxu0 0
      %421 = vmatprep.subr.bf16.mxu0 0
      %422 = vmatpush1.bf16.msra.mxu0 0
      %423 = vmatprep.subr.bf16.mxu0 0
      %424 = vmatpush1.bf16.msra.mxu0 0
      %425 = vmatprep.subr.bf16.mxu0 0
      %426 = vmatpush1.bf16.msra.mxu0 0
      %427 = vmatprep.subr.bf16.mxu0 0
      %428 = vmatpush1.bf16.msra.mxu0 0
      %429 = vmatprep.subr.bf16.mxu0 0
      %430 = vmatpush1.bf16.msra.mxu0 0
      %431 = vmatprep.subr.bf16.mxu0 0
      %432 = vmatpush1.bf16.msra.mxu0 0
      %433 = vmatprep.subr.bf16.mxu0 0
      %434 = vmatpush1.bf16.msra.mxu0 0
      %435 = vmatprep.mubr.bf16.mxu0 0
      %436 = vmatmul.mubr.bf16.gmra.mrb[0].mxu0 %v392
      %v437 = vpop.f32.mrb[0].mxu0
      %v438 = vadd.f32 0.0, %v437
      %v439 = vpop.f32.mrb[0].mxu0
      %v440 = vpop.f32.mrb[0].mxu0
      %v441 = vadd.f32 0.0, %v440
      %v442 = vpop.f32.mrb[0].mxu0
      %443 = vmatprep.mubr.bf16.mxu0 0
      %444 = vmatmul.mubr.bf16.gmra.mrb[0].mxu0 %v395
      %v445 = vpop.f32.mrb[0].mxu0
      %v446 = vadd.f32 0.0, %v445
      %v447 = vpop.f32.mrb[0].mxu0
      %v448 = vpop.f32.mrb[0].mxu0
      %v449 = vadd.f32 0.0, %v448
      %v450 = vpop.f32.mrb[0].mxu0
      %451 = vmatprep.mubr.bf16.mxu0 0
      %452 = vmatmul.mubr.bf16.gmra.mrb[0].mxu0 %v398
      %v453 = vpop.f32.mrb[0].mxu0
      %v454 = vadd.f32 0.0, %v453
      %v455 = vpop.f32.mrb[0].mxu0
      %v456 = vpop.f32.mrb[0].mxu0
      %v457 = vadd.f32 0.0, %v456
      %v458 = vpop.f32.mrb[0].mxu0
      %459 = vmatprep.mubr.bf16.mxu0 0
      %460 = vmatmul.mubr.bf16.gmra.mrb[0].mxu0 %v401
      %v461 = vpop.f32.mrb[0].mxu0
      %v462 = vadd.f32 0.0, %v461
      %v463 = vpop.f32.mrb[0].mxu0
      %v464 = vpop.f32.mrb[0].mxu0
      %v465 = vadd.f32 0.0, %v464
      %v466 = vpop.f32.mrb[0].mxu0
      %467 = vdwg.mxu0
      %v468 = vstv %s227
      %v469 = vmul.f32 %v468, %v219
      %v470 = vmul.f32 %v468, %v220
      %v471 = vmul.f32 %v468, %v221
      %v472 = vmul.f32 %v468, %v222
      %v473 = vmul.f32 %v468, %v223
      %v474 = vmul.f32 %v468, %v224
      %v475 = vmul.f32 %v468, %v225
      %v476 = vmul.f32 %v468, %v226
      %v477 = vstv %s235
      %v478 = vmul.f32 %v477, %v327
      %v479 = vmul.f32 %v477, %v330
      %v480 = vmul.f32 %v477, %v335
      %v481 = vmul.f32 %v477, %v338
      %v482 = vmul.f32 %v477, %v343
      %v483 = vmul.f32 %v477, %v346
      %v484 = vmul.f32 %v477, %v351
      %v485 = vmul.f32 %v477, %v354
      %v486 = vadd.f32 %v469, %v478
      %v487 = vadd.f32 %v470, %v479
      %v488 = vadd.f32 %v471, %v480
      %v489 = vadd.f32 %v472, %v481
      %v490 = vadd.f32 %v473, %v482
      %v491 = vadd.f32 %v474, %v483
      %v492 = vadd.f32 %v475, %v484
      %v493 = vadd.f32 %v476, %v485
      %v494 = vstv %s239
      %v495 = vmul.f32 %v494, %v193
      %v496 = vmul.f32 %v494, %v194
      %v497 = vmul.f32 %v494, %v195
      %v498 = vmul.f32 %v494, %v196
      %v499 = vmul.f32 %v494, %v197
      %v500 = vmul.f32 %v494, %v198
      %v501 = vmul.f32 %v494, %v199
      %v502 = vmul.f32 %v494, %v200
      %v503 = vmul.f32 %v477, %v438
      %v504 = vmul.f32 %v477, %v441
      %v505 = vmul.f32 %v477, %v446
      %v506 = vmul.f32 %v477, %v449
      %v507 = vmul.f32 %v477, %v454
      %v508 = vmul.f32 %v477, %v457
      %v509 = vmul.f32 %v477, %v462
      %v510 = vmul.f32 %v477, %v465
      %v511 = vadd.f32 %v495, %v503
      %v512 = vadd.f32 %v496, %v504
      %v513 = vadd.f32 %v497, %v505
      %v514 = vadd.f32 %v498, %v506
      %v515 = vadd.f32 %v499, %v507
      %v516 = vadd.f32 %v500, %v508
      %v517 = vadd.f32 %v501, %v509
      %v518 = vadd.f32 %v502, %v510
      %v519 = vpack.c.bf16 %v487, %v486
      %v520 = vpack.c.bf16 %v489, %v488
      %v521 = vpack.c.bf16 %v491, %v490
      %v522 = vpack.c.bf16 %v493, %v492
      %v531 = vunpack.c.l.b16 %v201
      %v532 = vunpack.c.l.b16 %v202
      %v533 = vunpack.c.l.b16 %v203
      %v534 = vunpack.c.l.b16 %v204
      %v535 = vunpack.c.l.b16 %v205
      %v536 = vunpack.c.l.b16 %v206
      %v537 = vunpack.c.l.b16 %v207
      %v538 = vunpack.c.l.b16 %v208
      %v539 = vpack.c.b16 %v532, %v531
      %v540 = vpack.c.b16 %v534, %v533
      %v541 = vpack.c.b16 %v536, %v535
      %v542 = vpack.c.b16 %v538, %v537
      %v544 = vsel %vm279, %v539, 0
      %v547 = vsel %vm279, %v540, 0
      %v550 = vsel %vm279, %v541, 0
      %v553 = vsel %vm279, %v542, 0
      %555 = vmatprep.subr.bf16.mxu0 0
      %556 = vmatpush1.bf16.msra.mxu0 %v519
      %557 = vmatprep.subr.bf16.mxu0 0
      %558 = vmatpush1.bf16.msra.mxu0 %v520
      %559 = vmatprep.subr.bf16.mxu0 0
      %560 = vmatpush1.bf16.msra.mxu0 %v521
      %561 = vmatprep.subr.bf16.mxu0 0
      %562 = vmatpush1.bf16.msra.mxu0 %v522
      %563 = vmatprep.subr.bf16.mxu0 0
      %564 = vmatpush1.bf16.msra.mxu0 0
      %565 = vmatprep.subr.bf16.mxu0 0
      %566 = vmatpush1.bf16.msra.mxu0 0
      %567 = vmatprep.subr.bf16.mxu0 0
      %568 = vmatpush1.bf16.msra.mxu0 0
      %569 = vmatprep.subr.bf16.mxu0 0
      %570 = vmatpush1.bf16.msra.mxu0 0
      %571 = vmatprep.subr.bf16.mxu0 0
      %572 = vmatpush1.bf16.msra.mxu0 0
      %573 = vmatprep.subr.bf16.mxu0 0
      %574 = vmatpush1.bf16.msra.mxu0 0
      %575 = vmatprep.subr.bf16.mxu0 0
      %576 = vmatpush1.bf16.msra.mxu0 0
      %577 = vmatprep.subr.bf16.mxu0 0
      %578 = vmatpush1.bf16.msra.mxu0 0
      %579 = vmatprep.subr.bf16.mxu0 0
      %580 = vmatpush1.bf16.msra.mxu0 0
      %581 = vmatprep.subr.bf16.mxu0 0
      %582 = vmatpush1.bf16.msra.mxu0 0
      %583 = vmatprep.subr.bf16.mxu0 0
      %584 = vmatpush1.bf16.msra.mxu0 0
      %585 = vmatprep.subr.bf16.mxu0 0
      %586 = vmatpush1.bf16.msra.mxu0 0
      %587 = vmatprep.mubr.bf16.mxu0 0
      %588 = vmatmul.mubr.bf16.gmra.mrb[0].mxu0 %v544
      %v589 = vpop.f32.mrb[0].mxu0
      %v590 = vadd.f32 %v511, %v589
      %v591 = vpop.f32.mrb[0].mxu0
      %v592 = vpop.f32.mrb[0].mxu0
      %v593 = vadd.f32 %v512, %v592
      %v594 = vpop.f32.mrb[0].mxu0
      %595 = vmatprep.mubr.bf16.mxu0 0
      %596 = vmatmul.mubr.bf16.gmra.mrb[0].mxu0 %v547
      %v597 = vpop.f32.mrb[0].mxu0
      %v598 = vadd.f32 %v513, %v597
      %v599 = vpop.f32.mrb[0].mxu0
      %v600 = vpop.f32.mrb[0].mxu0
      %v601 = vadd.f32 %v514, %v600
      %v602 = vpop.f32.mrb[0].mxu0
      %603 = vmatprep.mubr.bf16.mxu0 0
      %604 = vmatmul.mubr.bf16.gmra.mrb[0].mxu0 %v550
      %v605 = vpop.f32.mrb[0].mxu0
      %v606 = vadd.f32 %v515, %v605
      %v607 = vpop.f32.mrb[0].mxu0
      %v608 = vpop.f32.mrb[0].mxu0
      %v609 = vadd.f32 %v516, %v608
      %v610 = vpop.f32.mrb[0].mxu0
      %611 = vmatprep.mubr.bf16.mxu0 0
      %612 = vmatmul.mubr.bf16.gmra.mrb[0].mxu0 %v553
      %v613 = vpop.f32.mrb[0].mxu0
      %v614 = vadd.f32 %v517, %v613
      %v615 = vpop.f32.mrb[0].mxu0
      %v616 = vpop.f32.mrb[0].mxu0
      %v617 = vadd.f32 %v518, %v616
      %v618 = vpop.f32.mrb[0].mxu0
      %619 = vdwg.mxu0
      %v620 = vmax.f32 %v590, 0.0
      %v621 = vmax.f32 %v593, 0.0
      %v622 = vmax.f32 %v598, 0.0
      %v623 = vmax.f32 %v601, 0.0
      %v624 = vmax.f32 %v606, 0.0
      %v625 = vmax.f32 %v609, 0.0
      %v626 = vmax.f32 %v614, 0.0
      %v627 = vmax.f32 %v617, 0.0
    $region46: #{gcnii_forward.1} parent=1 // loop_footer
      %s218 = sadd.s32 1, %s214
    $region47: #{gcnii_forward.1} parent=1 // loop_footer_branch
      %213 = sbr.rel target = $region43
    $region48: #{gcnii_forward.1} parent=1 // loop_exit
      _
    %v628 = vld [vmem:[%s7] sm:$0xff]
    %v629 = vld [vmem:[%s7 + $0x8] sm:$0xff]
    %v630 = vld [vmem:[%s7 + $0x10] sm:$0xff]
    %v631 = vld [vmem:[%s7 + $0x18] sm:$0xff]
    %v632 = vld [vmem:[%s7 + $0x20] sm:$0xff]
    %v633 = vld [vmem:[%s7 + $0x28] sm:$0xff]
    %v634 = vld [vmem:[%s7 + $0x30] sm:$0xff]
    %v635 = vld [vmem:[%s7 + $0x38] sm:$0xff]
    %v636 = vld [vmem:[%s8] sm:$0x1]
    %v638 = vlaneseq
    %v639 = vshrl.u32 %v638, 7
    %v640 = vsub.s32 0, %v639
    %v641 = vrot.slane %v636, %v640
    %vm643 = vcmask 523264
    %v645 = vsel %vm643, %v219, 0
    %v648 = vsel %vm643, %v220, 0
    %v651 = vsel %vm643, %v221, 0
    %v654 = vsel %vm643, %v222, 0
    %v657 = vsel %vm643, %v223, 0
    %v660 = vsel %vm643, %v224, 0
    %v663 = vsel %vm643, %v225, 0
    %v666 = vsel %vm643, %v226, 0
    %668 = vmatprep.subr.mxu0 0.0
    %669 = vmatpush1.msra.mxu0 %v628
    %670 = vmatprep.subr.mxu0 0.0
    %671 = vmatpush1.msra.mxu0 %v629
    %672 = vmatprep.subr.mxu0 0.0
    %673 = vmatpush1.msra.mxu0 %v630
    %674 = vmatprep.subr.mxu0 0.0
    %675 = vmatpush1.msra.mxu0 %v631
    %676 = vmatprep.subr.mxu0 0.0
    %677 = vmatpush1.msra.mxu0 %v632
    %678 = vmatprep.subr.mxu0 0.0
    %679 = vmatpush1.msra.mxu0 %v633
    %680 = vmatprep.subr.mxu0 0.0
    %681 = vmatpush1.msra.mxu0 %v634
    %682 = vmatprep.subr.mxu0 0.0
    %683 = vmatpush1.msra.mxu0 %v635
    %684 = vmatprep.subr.mxu0 0.0
    %685 = vmatpush1.msra.mxu0 0.0
    %686 = vmatprep.subr.mxu0 0.0
    %687 = vmatpush1.msra.mxu0 0.0
    %688 = vmatprep.subr.mxu0 0.0
    %689 = vmatpush1.msra.mxu0 0.0
    %690 = vmatprep.subr.mxu0 0.0
    %691 = vmatpush1.msra.mxu0 0.0
    %692 = vmatprep.subr.mxu0 0.0
    %693 = vmatpush1.msra.mxu0 0.0
    %694 = vmatprep.subr.mxu0 0.0
    %695 = vmatpush1.msra.mxu0 0.0
    %696 = vmatprep.subr.mxu0 0.0
    %697 = vmatpush1.msra.mxu0 0.0
    %698 = vmatprep.subr.mxu0 0.0
    %699 = vmatpush1.msra.mxu0 0.0
    %700 = vmatprep.subr.mxu0 0.0
    %701 = vmatpush1.msra.mxu0 0.0
    %702 = vmatprep.subr.mxu0 0.0
    %703 = vmatpush1.msra.mxu0 0.0
    %704 = vmatprep.subr.mxu0 0.0
    %705 = vmatpush1.msra.mxu0 0.0
    %706 = vmatprep.subr.mxu0 0.0
    %707 = vmatpush1.msra.mxu0 0.0
    %708 = vmatprep.subr.mxu0 0.0
    %709 = vmatpush1.msra.mxu0 0.0
    %710 = vmatprep.subr.mxu0 0.0
    %711 = vmatpush1.msra.mxu0 0.0
    %712 = vmatprep.subr.mxu0 0.0
    %713 = vmatpush1.msra.mxu0 0.0
    %714 = vmatprep.subr.mxu0 0.0
    %715 = vmatpush1.msra.mxu0 0.0
    %716 = vmatprep.subr.mxu0 0.0
    %717 = vmatpush1.msra.mxu0 0.0
    %718 = vmatprep.subr.mxu0 0.0
    %719 = vmatpush1.msra.mxu0 0.0
    %720 = vmatprep.subr.mxu0 0.0
    %721 = vmatpush1.msra.mxu0 0.0
    %722 = vmatprep.subr.mxu0 0.0
    %723 = vmatpush1.msra.mxu0 0.0
    %724 = vmatprep.subr.mxu0 0.0
    %725 = vmatpush1.msra.mxu0 0.0
    %726 = vmatprep.subr.mxu0 0.0
    %727 = vmatpush1.msra.mxu0 0.0
    %728 = vmatprep.subr.mxu0 0.0
    %729 = vmatpush1.msra.mxu0 0.0
    %730 = vmatprep.subr.mxu0 0.0
    %731 = vmatpush1.msra.mxu0 0.0
    %732 = vmatprep.mubr.f32.mxu0 0.0
    %733 = vmatmul.mubr.f32.gmra.mrb[0].mxu0 %v645
    %v734 = vpop.f32.mrb[0].mxu0
    %v735 = vadd.f32 %v641, %v734
    %v736 = vpop.f32.mrb[0].mxu0
    %737 = vmatprep.mubr.f32.mxu0 0.0
    %738 = vmatmul.mubr.f32.gmra.mrb[0].mxu0 %v648
    %v739 = vpop.f32.mrb[0].mxu0
    %v740 = vadd.f32 %v641, %v739
    %v741 = vpop.f32.mrb[0].mxu0
    %742 = vmatprep.mubr.f32.mxu0 0.0
    %743 = vmatmul.mubr.f32.gmra.mrb[0].mxu0 %v651
    %v744 = vpop.f32.mrb[0].mxu0
    %v745 = vadd.f32 %v641, %v744
    %v746 = vpop.f32.mrb[0].mxu0
    %747 = vmatprep.mubr.f32.mxu0 0.0
    %748 = vmatmul.mubr.f32.gmra.mrb[0].mxu0 %v654
    %v749 = vpop.f32.mrb[0].mxu0
    %v750 = vadd.f32 %v641, %v749
    %v751 = vpop.f32.mrb[0].mxu0
    %752 = vmatprep.mubr.f32.mxu0 0.0
    %753 = vmatmul.mubr.f32.gmra.mrb[0].mxu0 %v657
    %v754 = vpop.f32.mrb[0].mxu0
    %v755 = vadd.f32 %v641, %v754
    %v756 = vpop.f32.mrb[0].mxu0
    %757 = vmatprep.mubr.f32.mxu0 0.0
    %758 = vmatmul.mubr.f32.gmra.mrb[0].mxu0 %v660
    %v759 = vpop.f32.mrb[0].mxu0
    %v760 = vadd.f32 %v641, %v759
    %v761 = vpop.f32.mrb[0].mxu0
    %762 = vmatprep.mubr.f32.mxu0 0.0
    %763 = vmatmul.mubr.f32.gmra.mrb[0].mxu0 %v663
    %v764 = vpop.f32.mrb[0].mxu0
    %v765 = vadd.f32 %v641, %v764
    %v766 = vpop.f32.mrb[0].mxu0
    %767 = vmatprep.mubr.f32.mxu0 0.0
    %768 = vmatmul.mubr.f32.gmra.mrb[0].mxu0 %v666
    %v769 = vpop.f32.mrb[0].mxu0
    %v770 = vadd.f32 %v641, %v769
    %v771 = vpop.f32.mrb[0].mxu0
    %772 = vdwg.mxu0
    %773 = vmax.xlane.f32.xlu0 %v735
    %v774 = vpop.xlane.xlu0 %773
    %775 = vmax.xlane.f32.xlu0 %v740
    %v776 = vpop.xlane.xlu0 %775
    %777 = vmax.xlane.f32.xlu0 %v745
    %v778 = vpop.xlane.xlu0 %777
    %779 = vmax.xlane.f32.xlu0 %v750
    %v780 = vpop.xlane.xlu0 %779
    %781 = vmax.xlane.f32.xlu0 %v755
    %v782 = vpop.xlane.xlu0 %781
    %783 = vmax.xlane.f32.xlu0 %v760
    %v784 = vpop.xlane.xlu0 %783
    %785 = vmax.xlane.f32.xlu0 %v765
    %v786 = vpop.xlane.xlu0 %785
    %787 = vmax.xlane.f32.xlu0 %v770
    %v788 = vpop.xlane.xlu0 %787
    %v789 = vsub.f32 %v735, %v774
    %v790 = vsub.f32 %v740, %v776
    %v791 = vsub.f32 %v745, %v778
    %v792 = vsub.f32 %v750, %v780
    %v793 = vsub.f32 %v755, %v782
    %v794 = vsub.f32 %v760, %v784
    %v795 = vsub.f32 %v765, %v786
    %v796 = vsub.f32 %v770, %v788
    %v797 = vmul.f32 %v789, 1.442695
    %v798 = vpow.pop %v797
    %v799 = vmul.f32 %v790, 1.442695
    %v800 = vpow.pop %v799
    %v801 = vmul.f32 %v791, 1.442695
    %v802 = vpow.pop %v801
    %v803 = vmul.f32 %v792, 1.442695
    %v804 = vpow.pop %v803
    %v805 = vmul.f32 %v793, 1.442695
    %v806 = vpow.pop %v805
    %v807 = vmul.f32 %v794, 1.442695
    %v808 = vpow.pop %v807
    %v809 = vmul.f32 %v795, 1.442695
    %v810 = vpow.pop %v809
    %v811 = vmul.f32 %v796, 1.442695
    %v812 = vpow.pop %v811
    %813 = vadd.xlane.f32.xlu0 %v798
    %v814 = vpop.xlane.xlu0 %813
    %815 = vadd.xlane.f32.xlu0 %v800
    %v816 = vpop.xlane.xlu0 %815
    %817 = vadd.xlane.f32.xlu0 %v802
    %v818 = vpop.xlane.xlu0 %817
    %819 = vadd.xlane.f32.xlu0 %v804
    %v820 = vpop.xlane.xlu0 %819
    %821 = vadd.xlane.f32.xlu0 %v806
    %v822 = vpop.xlane.xlu0 %821
    %823 = vadd.xlane.f32.xlu0 %v808
    %v824 = vpop.xlane.xlu0 %823
    %825 = vadd.xlane.f32.xlu0 %v810
    %v826 = vpop.xlane.xlu0 %825
    %827 = vadd.xlane.f32.xlu0 %v812
    %v828 = vpop.xlane.xlu0 %827
    %v829 = vlog2.pop %v814
    %v830 = vmul.f32 %v829, 0.6931472
    %v831 = vlog2.pop %v816
    %v832 = vmul.f32 %v831, 0.6931472
    %v833 = vlog2.pop %v818
    %v834 = vmul.f32 %v833, 0.6931472
    %v835 = vlog2.pop %v820
    %v836 = vmul.f32 %v835, 0.6931472
    %v837 = vlog2.pop %v822
    %v838 = vmul.f32 %v837, 0.6931472
    %v839 = vlog2.pop %v824
    %v840 = vmul.f32 %v839, 0.6931472
    %v841 = vlog2.pop %v826
    %v842 = vmul.f32 %v841, 0.6931472
    %v843 = vlog2.pop %v828
    %v844 = vmul.f32 %v843, 0.6931472
    %v845 = vsub.f32 %v789, %v830
    %v846 = vsub.f32 %v790, %v832
    %v847 = vsub.f32 %v791, %v834
    %v848 = vsub.f32 %v792, %v836
    %v849 = vsub.f32 %v793, %v838
    %v850 = vsub.f32 %v794, %v840
    %v851 = vsub.f32 %v795, %v842
    %v852 = vsub.f32 %v796, %v844
    %853 = vst [vmem:[%s9] sm:$0xff] %v845
    %854 = vst [vmem:[%s9 + $0x8] sm:$0xff] %v846
    %855 = vst [vmem:[%s9 + $0x10] sm:$0xff] %v847
    %856 = vst [vmem:[%s9 + $0x18] sm:$0xff] %v848
    %857 = vst [vmem:[%s9 + $0x20] sm:$0xff] %v849
    %858 = vst [vmem:[%s9 + $0x28] sm:$0xff] %v850
    %859 = vst [vmem:[%s9 + $0x30] sm:$0xff] %v851
    %860 = vst [vmem:[%s9 + $0x38] sm:$0xff] %v852
    // Predicated region
    $region49: #{gcnii_forward.1} parent=1 // pred_check
      _
    $region50: #{gcnii_forward.1} parent=1 // pred_check_branch
      %862 = sbr.rel (0) target = $region52
    $region51: #{gcnii_forward.1} parent=1 // pred_region
      _
    $region52: #{gcnii_forward.1} parent=1 // pred_fallthru
      _
    // Predicated region
    $region53: #{gcnii_forward.1} parent=1 // pred_check
      _
    $region54: #{gcnii_forward.1} parent=1 // pred_check_branch
      %864 = sbr.rel (0) target = $region56
    $region55: #{gcnii_forward.1} parent=1 // pred_region
      _
    $region56: #{gcnii_forward.1} parent=1 // pred_fallthru
      _
    %865 = vsyncpa [#allocation3], 1

</llo_original>
